<compile_context>
chip_gen: v6e
topology: v6e:2x2x1
jax: 0.10.0
libtpu: 0.0.40
codegen_flags: <defaults>
</compile_context>

<pallas_src>
import jax
import jax.numpy as jnp
import numpy as np
from jax.experimental import pallas as pl
from jax.experimental.pallas import tpu as pltpu

_LANES = 128
_SUBLANES = 8
_GROUP = _LANES * _SUBLANES          # 1024 elements per (8, 128) row-group
_MAX_BLOCK_ROWS = 8192               # 8192 x 128 f32 = 4 MiB per input per grid step
_MIN_BLOCK_ROWS = 1024               # don't shrink blocks below this to chase exact division


def _dot_kernel(a_ref, b_ref, o_ref, acc_ref):
    """One grid step of the streaming dot product.

    a_ref, b_ref: (block_rows, 128) f32 input tiles (auto-pipelined from HBM).
    o_ref:        (1, 1) f32 output block, resident across the whole grid.
    acc_ref:      (1, 128) f32 VMEM scratch holding per-lane partial sums.
    """
    @pl.when(pl.program_id(0) == 0)
    def _init():
        acc_ref[...] = jnp.zeros_like(acc_ref)

    prod = a_ref[...] * b_ref[...]                            # VPU elementwise
    acc_ref[...] += jnp.sum(prod, axis=0, keepdims=True)      # sublane reduce -> (1, 128)

    # Cross-lane reduce (XLU slot — essentially free in this HBM-bound kernel).
    # The value written on the last grid step is the final dot product, so no
    # extra partials-sum op is needed in the wrapper.
    o_ref[...] = jnp.sum(acc_ref[...], axis=1, keepdims=True)


def dot4(input1: jax.Array, input2: jax.Array) -> jax.Array:
    """Dot product of two flat float32 vectors (matches Dot4Network.forward)."""
    a = jnp.ravel(input1).astype(jnp.float32)
    b = jnp.ravel(input2).astype(jnp.float32)
    if a.shape != b.shape:
        raise ValueError("inputs must have the same number of elements")
    n = a.shape[0]

    groups = n // _GROUP                     # number of full (8, 128) row-groups
    if groups == 0:
        # Too small for a single (8, 128) tile — plain f32 elementwise dot.
        return jnp.sum(a * b)

    # Block size (in row-groups): largest divisor of `groups` that keeps the
    # block <= _MAX_BLOCK_ROWS rows, so the grid covers every full group and
    # the wrapper tail is < 1024 elements.  Fall back to fixed max-size blocks
    # when the best divisor would make the blocks tiny (e.g. `groups` prime).
    max_gpb = _MAX_BLOCK_ROWS // _SUBLANES
    gpb = 1
    for cand in range(min(groups, max_gpb), 0, -1):
        if groups % cand == 0:
            gpb = cand
            break
    if gpb * _SUBLANES < _MIN_BLOCK_ROWS and gpb != groups:
        gpb = max_gpb                        # rare ragged fallback; tail handled below

    num_blocks = groups // gpb
    block_rows = gpb * _SUBLANES
    rows_main = num_blocks * block_rows
    n_main = rows_main * _LANES

    a_main = a if n_main == n else a[:n_main]
    b_main = b if n_main == n else b[:n_main]
    a2 = a_main.reshape(rows_main, _LANES)
    b2 = b_main.reshape(rows_main, _LANES)

    in_map = lambda i: (i, 0)

    # TODO(synk): optional 2-TensorCore split (pltpu.CORE_PARALLEL / pl.core_map)
    # for very large inputs on v7x; the single-core grid is already HBM-bound.
    out = pl.pallas_call(
        _dot_kernel,
        out_shape=jax.ShapeDtypeStruct((1, 1), jnp.float32),
        grid=(num_blocks,),
        in_specs=[
            pl.BlockSpec((block_rows, _LANES), in_map),
            pl.BlockSpec((block_rows, _LANES), in_map),
        ],
        out_specs=pl.BlockSpec((1, 1), lambda i: (0, 0)),
        scratch_shapes=[pltpu.VMEM((1, _LANES), jnp.float32)],
        compiler_params=pltpu.CompilerParams(
            dimension_semantics=("arbitrary",),          # reduction axis
            vmem_limit_bytes=32 * 1024 * 1024,           # 16 MiB double-buffered inputs + slack
        ),
        cost_estimate=pl.CostEstimate(
            flops=2 * n_main, transcendentals=0, bytes_accessed=8 * n_main + 4
        ),
    )(a2, b2)

    result = out[0, 0]
    if n_main != n:
        # Sub-block remainder (normally < 1024 elements); exact f32 elementwise dot.
        result = result + jnp.sum(a[n_main:] * b[n_main:])
    return result


class Dot4Network:
    """JAX/Pallas equivalent of the PyTorch Dot4Network module (forward only)."""

    def __call__(self, input1, input2):
        return dot4(input1, input2)


if __name__ == "__main__":
    key = jax.random.PRNGKey(0)
    k1, k2, k3 = jax.random.split(key, 3)
    dot = jax.jit(dot4)

    def ref(x, y):
        return float(np.dot(np.asarray(x, dtype=np.float64),
                            np.asarray(y, dtype=np.float64)))

    # 1) The actual Dot4Network workload: densenet121
    #    features.denseblock4.denselayer15.conv1.weight is (128, 960, 1, 1)
    #    -> 122880 f32 elements, dotted with itself (same tensor both sides).
    w = jax.random.normal(k1, (128, 960, 1, 1), dtype=jnp.float32)
    w_flat = w.reshape(-1)
    r1 = jax.block_until_ready(dot(w_flat, w_flat))
    np.testing.assert_allclose(float(r1), ref(w_flat, w_flat), rtol=3e-4, atol=5e-2)

    # 2) Non-aligned length: kernel bulk + (<1024-element) wrapper tail.
    x = jax.random.normal(k1, (50_001,), dtype=jnp.float32)
    y = jax.random.normal(k2, (50_001,), dtype=jnp.float32)
    r2 = jax.block_until_ready(dot(x, y))
    np.testing.assert_allclose(float(r2), ref(x, y), rtol=3e-4, atol=5e-2)

    # 3) Multi-block accumulation: two 8192-row grid steps + small tail.
    z = jax.random.normal(k2, (2 * 8192 * 128 + 1000,), dtype=jnp.float32)
    r3 = jax.block_until_ready(dot(z, z))
    np.testing.assert_allclose(float(r3), ref(z, z), rtol=3e-4, atol=5e-2)

    # 4) Awkward size (prime number of row-groups): fixed-block fallback + tail.
    u = jax.random.normal(k3, (1031 * 1024 + 37,), dtype=jnp.float32)
    v = jax.random.normal(k1, (1031 * 1024 + 37,), dtype=jnp.float32)
    r4 = jax.block_until_ready(dot(u, v))
    np.testing.assert_allclose(float(r4), ref(u, v), rtol=3e-4, atol=5e-2)

    # 5) Tiny input (< one (8,128) tile): pure-JAX fallback path.
    s = jax.random.normal(k3, (100,), dtype=jnp.float32)
    t = jax.random.normal(k2, (100,), dtype=jnp.float32)
    r5 = jax.block_until_ready(dot(s, t))
    np.testing.assert_allclose(float(r5), ref(s, t), rtol=3e-4, atol=1e-3)

    print("KERNEL_OK")
</pallas_src>

<mosaic_0001>
module attributes {stable_mosaic.version = 11 : i64} {
  func.func @_dot_kernel(%arg0: i32, %arg1: memref<960x128xf32, #tpu.memory_space<vmem>>, %arg2: memref<960x128xf32, #tpu.memory_space<vmem>>, %arg3: memref<1x1xf32, #tpu.memory_space<vmem>>, %arg4: memref<1x128xf32, #tpu.memory_space<vmem>>) attributes {dimension_semantics = [#tpu.dimension_semantics<arbitrary>], iteration_bounds = array<i64: 1>, scalar_prefetch = 0 : i64, scratch_operands = 1 : i64, tpu.core_type = #tpu.core_type<tc>, window_params = [{transform_indices = @transform_0, window_bounds = array<i64: 960, 128>}, {transform_indices = @transform_1, window_bounds = array<i64: 960, 128>}, {pipeline_mode = #tpu.pipeline_mode<synchronous>, transform_indices = @transform_2, window_bounds = array<i64: 1, 1>}]} {
    %c0_i32 = arith.constant 0 : i32
    %0 = arith.cmpi eq, %arg0, %c0_i32 : i32
    %1 = arith.extui %0 : i1 to i32
    %c0_i32_0 = arith.constant 0 : i32
    %2 = arith.cmpi ne, %1, %c0_i32_0 : i32
    scf.if %2 {
      %cst_13 = arith.constant 0.000000e+00 : f32
      %15 = vector.broadcast %cst_13 : f32 to vector<1x128xf32>
      %c0_14 = arith.constant 0 : index
      %c0_15 = arith.constant 0 : index
      %16 = vector.load %arg4[%c0_14, %c0_15] : memref<1x128xf32, #tpu.memory_space<vmem>>, vector<1x128xf32>
      tpu.vector_store %arg4[%c0_14, %c0_15], %15 {strides = array<i32>} : memref<1x128xf32, #tpu.memory_space<vmem>>, vector<1x128xf32>,
    } else {
    }
    %c0 = arith.constant 0 : index
    %c0_1 = arith.constant 0 : index
    %3 = vector.load %arg1[%c0, %c0_1] : memref<960x128xf32, #tpu.memory_space<vmem>>, vector<960x128xf32>
    %c0_2 = arith.constant 0 : index
    %c0_3 = arith.constant 0 : index
    %4 = vector.load %arg2[%c0_2, %c0_3] : memref<960x128xf32, #tpu.memory_space<vmem>>, vector<960x128xf32>
    %5 = arith.mulf %3, %4 : vector<960x128xf32>
    %c0_4 = arith.constant 0 : index
    %c0_5 = arith.constant 0 : index
    %6 = vector.load %arg4[%c0_4, %c0_5] : memref<1x128xf32, #tpu.memory_space<vmem>>, vector<1x128xf32>
    %cst = arith.constant dense<0.000000e+00> : vector<128xf32>
    %7 = vector.multi_reduction <add>, %5, %cst [0] : vector<960x128xf32> to vector<128xf32>
    %8 = vector.shape_cast %7 : vector<128xf32> to vector<1x128xf32>
    %9 = arith.addf %6, %8 : vector<1x128xf32>
    %c0_6 = arith.constant 0 : index
    %c0_7 = arith.constant 0 : index
    %10 = vector.load %arg4[%c0_6, %c0_7] : memref<1x128xf32, #tpu.memory_space<vmem>>, vector<1x128xf32>
    tpu.vector_store %arg4[%c0_6, %c0_7], %9 {strides = array<i32>} : memref<1x128xf32, #tpu.memory_space<vmem>>, vector<1x128xf32>,
    %c0_8 = arith.constant 0 : index
    %c0_9 = arith.constant 0 : index
    %11 = vector.load %arg4[%c0_8, %c0_9] : memref<1x128xf32, #tpu.memory_space<vmem>>, vector<1x128xf32>
    %cst_10 = arith.constant dense<0.000000e+00> : vector<1xf32>
    %12 = vector.multi_reduction <add>, %11, %cst_10 [1] : vector<1x128xf32> to vector<1xf32>
    %13 = vector.shape_cast %12 : vector<1xf32> to vector<1x1xf32>
    %c0_11 = arith.constant 0 : index
    %c0_12 = arith.constant 0 : index
    %14 = vector.load %arg3[%c0_11, %c0_12] : memref<1x1xf32, #tpu.memory_space<vmem>>, vector<1x1xf32>
    tpu.vector_store %arg3[%c0_11, %c0_12], %13 {strides = array<i32>} : memref<1x1xf32, #tpu.memory_space<vmem>>, vector<1x1xf32>,
    return
  }
  func.func @transform_0(%arg0: i32) -> (i32, i32) {
    %c0_i32 = arith.constant 0 : i32
    %c0_i32_0 = arith.constant 0 : i32
    return %arg0, %c0_i32 : i32, i32
  }
  func.func @transform_1(%arg0: i32) -> (i32, i32) {
    %c0_i32 = arith.constant 0 : i32
    %c0_i32_0 = arith.constant 0 : i32
    return %arg0, %c0_i32 : i32, i32
  }
  func.func @transform_2(%arg0: i32) -> (i32, i32) {
    %c0_i32 = arith.constant 0 : i32
    %c0_i32_0 = arith.constant 0 : i32
    %c0_i32_1 = arith.constant 0 : i32
    return %c0_i32, %c0_i32_0 : i32, i32
  }
}

</mosaic_0001>

<llo_original>
// kernel: dot4.1
$region0: #{dot4.1}
  #allocation0 [shape = 'u32[]', space=smem, size = 0x4, offset = 0x4, fixed_abs, tag = 'smem constant byte address 0x4 - core index']
  #allocation1 [shape = 'u32[144,128]{1,0:T(1,128)}', space=vmem, size = 0x12000, scoped, tag = 'internal scratch']
  #allocation2 [shape = 'f32[1,128]{1,0:T(1,128)}', space=vmem, size = 0x200, scoped, tag = 'scratch operand']
  %s0 = inlined_call_operand.hbm [shape: f32[960,128], index: 0, kind: input, shape index: {}]
  %s1 = inlined_call_operand.hbm [shape: f32[960,128], index: 1, kind: input, shape index: {}]
  %s2 = inlined_call_operand.hbm [shape: f32[1,1], index: 2, kind: output, shape index: {}]
  %s3 = sld [smem:[#allocation0]]
  $region30: #{dot4.1} parent=0
    _
  %s5 = ssub.s32 1, %s3
  %s6 = scalar_select 0, %s5, %s3
  $region1: #{dot4.1} parent=0
    #allocation3 [shape = 'u8[491520]{0}', space=vmem, size = 0x78000, scoped, tag = 'input window, operand 0, single buffered']
    #allocation4 [shape = 's32[1]{0}', space=sflag, size = 0x4, scoped, tag = 'scoped memory for dot4.1']
    #allocation5 [shape = 's32[1]{0}', space=sflag, size = 0x4, scoped, tag = 'scoped memory for dot4.1']
    #allocation6 [shape = 'u8[491520]{0}', space=vmem, size = 0x78000, scoped, tag = 'input window, operand 1, single buffered']
    #allocation7 [shape = 's32[1]{0}', space=sflag, size = 0x4, scoped, tag = 'scoped memory for dot4.1']
    #allocation8 [shape = 'u8[512]{0}', space=vmem, size = 0x400, scoped, tag = 'output window, operand 0, single buffered']
    %7 = vsyncpa [#allocation4], 0
    %8 = vsyncpa [#allocation7], 0
    %9 = vsyncpa [#allocation5], 0
    // Predicated region
    $region2: #{dot4.1} parent=1 // pred_check
      _
    $region3: #{dot4.1} parent=1 // pred_check_branch
      %11 = sbr.rel (0) target = $region5
    $region4: #{dot4.1} parent=1 // pred_region
      %s13 = ssub.s32 15360, 15360
      %14 = vsyncadd [#allocation4], %s13
      %s15 = sshll.u32 [#allocation3], 4
      %s16 = int_to_ptr.vmem [resolvable:$true] %s15
      %21 = dma.hbm_to_vmem [thread:$0]  %s0, 15360, %s16, [#allocation4], 128, 128, 8
    $region5: #{dot4.1} parent=1 // pred_fallthru
      _
    // Predicated region
    $region6: #{dot4.1} parent=1 // pred_check
      _
    $region7: #{dot4.1} parent=1 // pred_check_branch
      %23 = sbr.rel (0) target = $region9
    $region8: #{dot4.1} parent=1 // pred_region
      %s25 = ssub.s32 15360, 15360
      %26 = vsyncadd [#allocation7], %s25
      %s27 = sshll.u32 [#allocation6], 4
      %s28 = int_to_ptr.vmem [resolvable:$true] %s27
      %33 = dma.hbm_to_vmem [thread:$0]  %s1, 15360, %s28, [#allocation7], 128, 128, 8
    $region9: #{dot4.1} parent=1 // pred_fallthru
      _
    // Predicated region
    $region10: #{dot4.1} parent=1 // pred_check
      _
    $region11: #{dot4.1} parent=1 // pred_check_branch
      %35 = sbr.rel (0) target = $region13
    $region12: #{dot4.1} parent=1 // pred_region
      %36 = dma.done [#allocation4], 15360
    $region13: #{dot4.1} parent=1 // pred_fallthru
      _
    // Predicated region
    $region14: #{dot4.1} parent=1 // pred_check
      _
    $region15: #{dot4.1} parent=1 // pred_check_branch
      %38 = sbr.rel (0) target = $region17
    $region16: #{dot4.1} parent=1 // pred_region
      %39 = dma.done [#allocation7], 15360
    $region17: #{dot4.1} parent=1 // pred_fallthru
      _
    %p40 = scmp.eq.s32.totalorder 0, 0
    // Predicated region
    $region18: #{dot4.1} parent=1 // pred_check
      %p41 = pneg %p40
    $region19: #{dot4.1} parent=1 // pred_check_branch
      %43 = sbr.rel (%p41) target = $region21
    $region20: #{dot4.1} parent=1 // pred_region
      %44 = vst [vmem:[#allocation2] sm:$0x1] 0.0
    $region21: #{dot4.1} parent=1 // pred_fallthru
      _
    %v45 = vld [vmem:[#allocation3] sm:$0xff]
    %v46 = vld [vmem:[#allocation3 + $0x8] sm:$0xff]
    %v47 = vld [vmem:[#allocation3 + $0x10] sm:$0xff]
    %v48 = vld [vmem:[#allocation3 + $0x18] sm:$0xff]
    %v49 = vld [vmem:[#allocation3 + $0x20] sm:$0xff]
    %v50 = vld [vmem:[#allocation3 + $0x28] sm:$0xff]
    %v51 = vld [vmem:[#allocation3 + $0x30] sm:$0xff]
    %v52 = vld [vmem:[#allocation3 + $0x38] sm:$0xff]
    %v53 = vld [vmem:[#allocation3 + $0x40] sm:$0xff]
    %v54 = vld [vmem:[#allocation3 + $0x48] sm:$0xff]
    %v55 = vld [vmem:[#allocation3 + $0x50] sm:$0xff]
    %v56 = vld [vmem:[#allocation3 + $0x58] sm:$0xff]
    %v57 = vld [vmem:[#allocation3 + $0x60] sm:$0xff]
    %v58 = vld [vmem:[#allocation3 + $0x68] sm:$0xff]
    %v59 = vld [vmem:[#allocation3 + $0x70] sm:$0xff]
    %v60 = vld [vmem:[#allocation3 + $0x78] sm:$0xff]
    %v61 = vld [vmem:[#allocation3 + $0x80] sm:$0xff]
    %v62 = vld [vmem:[#allocation3 + $0x88] sm:$0xff]
    %v63 = vld [vmem:[#allocation3 + $0x90] sm:$0xff]
    %v64 = vld [vmem:[#allocation3 + $0x98] sm:$0xff]
    %v65 = vld [vmem:[#allocation3 + $0xa0] sm:$0xff]
    %v66 = vld [vmem:[#allocation3 + $0xa8] sm:$0xff]
    %v67 = vld [vmem:[#allocation3 + $0xb0] sm:$0xff]
    %v68 = vld [vmem:[#allocation3 + $0xb8] sm:$0xff]
    %v69 = vld [vmem:[#allocation3 + $0xc0] sm:$0xff]
    %v70 = vld [vmem:[#allocation3 + $0xc8] sm:$0xff]
    %v71 = vld [vmem:[#allocation3 + $0xd0] sm:$0xff]
    %v72 = vld [vmem:[#allocation3 + $0xd8] sm:$0xff]
    %v73 = vld [vmem:[#allocation3 + $0xe0] sm:$0xff]
    %v74 = vld [vmem:[#allocation3 + $0xe8] sm:$0xff]
    %v75 = vld [vmem:[#allocation3 + $0xf0] sm:$0xff]
    %v76 = vld [vmem:[#allocation3 + $0xf8] sm:$0xff]
    %v77 = vld [vmem:[#allocation3 + $0x100] sm:$0xff]
    %v78 = vld [vmem:[#allocation3 + $0x108] sm:$0xff]
    %v79 = vld [vmem:[#allocation3 + $0x110] sm:$0xff]
    %v80 = vld [vmem:[#allocation3 + $0x118] sm:$0xff]
    %v81 = vld [vmem:[#allocation3 + $0x120] sm:$0xff]
    %v82 = vld [vmem:[#allocation3 + $0x128] sm:$0xff]
    %v83 = vld [vmem:[#allocation3 + $0x130] sm:$0xff]
    %v84 = vld [vmem:[#allocation3 + $0x138] sm:$0xff]
    %v85 = vld [vmem:[#allocation3 + $0x140] sm:$0xff]
    %v86 = vld [vmem:[#allocation3 + $0x148] sm:$0xff]
    %v87 = vld [vmem:[#allocation3 + $0x150] sm:$0xff]
    %v88 = vld [vmem:[#allocation3 + $0x158] sm:$0xff]
    %v89 = vld [vmem:[#allocation3 + $0x160] sm:$0xff]
    %v90 = vld [vmem:[#allocation3 + $0x168] sm:$0xff]
    %v91 = vld [vmem:[#allocation3 + $0x170] sm:$0xff]
    %v92 = vld [vmem:[#allocation3 + $0x178] sm:$0xff]
    %v93 = vld [vmem:[#allocation3 + $0x180] sm:$0xff]
    %v94 = vld [vmem:[#allocation3 + $0x188] sm:$0xff]
    %v95 = vld [vmem:[#allocation3 + $0x190] sm:$0xff]
    %v96 = vld [vmem:[#allocation3 + $0x198] sm:$0xff]
    %v97 = vld [vmem:[#allocation3 + $0x1a0] sm:$0xff]
    %v98 = vld [vmem:[#allocation3 + $0x1a8] sm:$0xff]
    %v99 = vld [vmem:[#allocation3 + $0x1b0] sm:$0xff]
    %v100 = vld [vmem:[#allocation3 + $0x1b8] sm:$0xff]
    %v101 = vld [vmem:[#allocation3 + $0x1c0] sm:$0xff]
    %v102 = vld [vmem:[#allocation3 + $0x1c8] sm:$0xff]
    %v103 = vld [vmem:[#allocation3 + $0x1d0] sm:$0xff]
    %v104 = vld [vmem:[#allocation3 + $0x1d8] sm:$0xff]
    %v105 = vld [vmem:[#allocation3 + $0x1e0] sm:$0xff]
    %v106 = vld [vmem:[#allocation3 + $0x1e8] sm:$0xff]
    %v107 = vld [vmem:[#allocation3 + $0x1f0] sm:$0xff]
    %v108 = vld [vmem:[#allocation3 + $0x1f8] sm:$0xff]
    %v109 = vld [vmem:[#allocation3 + $0x200] sm:$0xff]
    %v110 = vld [vmem:[#allocation3 + $0x208] sm:$0xff]
    %v111 = vld [vmem:[#allocation3 + $0x210] sm:$0xff]
    %v112 = vld [vmem:[#allocation3 + $0x218] sm:$0xff]
    %v113 = vld [vmem:[#allocation3 + $0x220] sm:$0xff]
    %v114 = vld [vmem:[#allocation3 + $0x228] sm:$0xff]
    %v115 = vld [vmem:[#allocation3 + $0x230] sm:$0xff]
    %v116 = vld [vmem:[#allocation3 + $0x238] sm:$0xff]
    %v117 = vld [vmem:[#allocation3 + $0x240] sm:$0xff]
    %v118 = vld [vmem:[#allocation3 + $0x248] sm:$0xff]
    %v119 = vld [vmem:[#allocation3 + $0x250] sm:$0xff]
    %v120 = vld [vmem:[#allocation3 + $0x258] sm:$0xff]
    %v121 = vld [vmem:[#allocation3 + $0x260] sm:$0xff]
    %v122 = vld [vmem:[#allocation3 + $0x268] sm:$0xff]
    %v123 = vld [vmem:[#allocation3 + $0x270] sm:$0xff]
    %v124 = vld [vmem:[#allocation3 + $0x278] sm:$0xff]
    %v125 = vld [vmem:[#allocation3 + $0x280] sm:$0xff]
    %v126 = vld [vmem:[#allocation3 + $0x288] sm:$0xff]
    %v127 = vld [vmem:[#allocation3 + $0x290] sm:$0xff]
    %v128 = vld [vmem:[#allocation3 + $0x298] sm:$0xff]
    %v129 = vld [vmem:[#allocation3 + $0x2a0] sm:$0xff]
    %v130 = vld [vmem:[#allocation3 + $0x2a8] sm:$0xff]
    %v131 = vld [vmem:[#allocation3 + $0x2b0] sm:$0xff]
    %v132 = vld [vmem:[#allocation3 + $0x2b8] sm:$0xff]
    %v133 = vld [vmem:[#allocation3 + $0x2c0] sm:$0xff]
    %v134 = vld [vmem:[#allocation3 + $0x2c8] sm:$0xff]
    %v135 = vld [vmem:[#allocation3 + $0x2d0] sm:$0xff]
    %v136 = vld [vmem:[#allocation3 + $0x2d8] sm:$0xff]
    %v137 = vld [vmem:[#allocation3 + $0x2e0] sm:$0xff]
    %v138 = vld [vmem:[#allocation3 + $0x2e8] sm:$0xff]
    %v139 = vld [vmem:[#allocation3 + $0x2f0] sm:$0xff]
    %v140 = vld [vmem:[#allocation3 + $0x2f8] sm:$0xff]
    %v141 = vld [vmem:[#allocation3 + $0x300] sm:$0xff]
    %v142 = vld [vmem:[#allocation3 + $0x308] sm:$0xff]
    %v143 = vld [vmem:[#allocation3 + $0x310] sm:$0xff]
    %v144 = vld [vmem:[#allocation3 + $0x318] sm:$0xff]
    %v145 = vld [vmem:[#allocation3 + $0x320] sm:$0xff]
    %v146 = vld [vmem:[#allocation3 + $0x328] sm:$0xff]
    %v147 = vld [vmem:[#allocation3 + $0x330] sm:$0xff]
    %v148 = vld [vmem:[#allocation3 + $0x338] sm:$0xff]
    %v149 = vld [vmem:[#allocation3 + $0x340] sm:$0xff]
    %v150 = vld [vmem:[#allocation3 + $0x348] sm:$0xff]
    %v151 = vld [vmem:[#allocation3 + $0x350] sm:$0xff]
    %v152 = vld [vmem:[#allocation3 + $0x358] sm:$0xff]
    %v153 = vld [vmem:[#allocation3 + $0x360] sm:$0xff]
    %v154 = vld [vmem:[#allocation3 + $0x368] sm:$0xff]
    %v155 = vld [vmem:[#allocation3 + $0x370] sm:$0xff]
    %v156 = vld [vmem:[#allocation3 + $0x378] sm:$0xff]
    %v157 = vld [vmem:[#allocation3 + $0x380] sm:$0xff]
    %v158 = vld [vmem:[#allocation3 + $0x388] sm:$0xff]
    %v159 = vld [vmem:[#allocation3 + $0x390] sm:$0xff]
    %v160 = vld [vmem:[#allocation3 + $0x398] sm:$0xff]
    %v161 = vld [vmem:[#allocation3 + $0x3a0] sm:$0xff]
    %v162 = vld [vmem:[#allocation3 + $0x3a8] sm:$0xff]
    %v163 = vld [vmem:[#allocation3 + $0x3b0] sm:$0xff]
    %v164 = vld [vmem:[#allocation3 + $0x3b8] sm:$0xff]
    %v165 = vld [vmem:[#allocation6] sm:$0xff]
    %v166 = vld [vmem:[#allocation6 + $0x8] sm:$0xff]
    %v167 = vld [vmem:[#allocation6 + $0x10] sm:$0xff]
    %v168 = vld [vmem:[#allocation6 + $0x18] sm:$0xff]
    %v169 = vld [vmem:[#allocation6 + $0x20] sm:$0xff]
    %v170 = vld [vmem:[#allocation6 + $0x28] sm:$0xff]
    %v171 = vld [vmem:[#allocation6 + $0x30] sm:$0xff]
    %v172 = vld [vmem:[#allocation6 + $0x38] sm:$0xff]
    %v173 = vld [vmem:[#allocation6 + $0x40] sm:$0xff]
    %v174 = vld [vmem:[#allocation6 + $0x48] sm:$0xff]
    %v175 = vld [vmem:[#allocation6 + $0x50] sm:$0xff]
    %v176 = vld [vmem:[#allocation6 + $0x58] sm:$0xff]
    %v177 = vld [vmem:[#allocation6 + $0x60] sm:$0xff]
    %v178 = vld [vmem:[#allocation6 + $0x68] sm:$0xff]
    %v179 = vld [vmem:[#allocation6 + $0x70] sm:$0xff]
    %v180 = vld [vmem:[#allocation6 + $0x78] sm:$0xff]
    %v181 = vld [vmem:[#allocation6 + $0x80] sm:$0xff]
    %v182 = vld [vmem:[#allocation6 + $0x88] sm:$0xff]
    %v183 = vld [vmem:[#allocation6 + $0x90] sm:$0xff]
    %v184 = vld [vmem:[#allocation6 + $0x98] sm:$0xff]
    %v185 = vld [vmem:[#allocation6 + $0xa0] sm:$0xff]
    %v186 = vld [vmem:[#allocation6 + $0xa8] sm:$0xff]
    %v187 = vld [vmem:[#allocation6 + $0xb0] sm:$0xff]
    %v188 = vld [vmem:[#allocation6 + $0xb8] sm:$0xff]
    %v189 = vld [vmem:[#allocation6 + $0xc0] sm:$0xff]
    %v190 = vld [vmem:[#allocation6 + $0xc8] sm:$0xff]
    %v191 = vld [vmem:[#allocation6 + $0xd0] sm:$0xff]
    %v192 = vld [vmem:[#allocation6 + $0xd8] sm:$0xff]
    %v193 = vld [vmem:[#allocation6 + $0xe0] sm:$0xff]
    %v194 = vld [vmem:[#allocation6 + $0xe8] sm:$0xff]
    %v195 = vld [vmem:[#allocation6 + $0xf0] sm:$0xff]
    %v196 = vld [vmem:[#allocation6 + $0xf8] sm:$0xff]
    %v197 = vld [vmem:[#allocation6 + $0x100] sm:$0xff]
    %v198 = vld [vmem:[#allocation6 + $0x108] sm:$0xff]
    %v199 = vld [vmem:[#allocation6 + $0x110] sm:$0xff]
    %v200 = vld [vmem:[#allocation6 + $0x118] sm:$0xff]
    %v201 = vld [vmem:[#allocation6 + $0x120] sm:$0xff]
    %v202 = vld [vmem:[#allocation6 + $0x128] sm:$0xff]
    %v203 = vld [vmem:[#allocation6 + $0x130] sm:$0xff]
    %v204 = vld [vmem:[#allocation6 + $0x138] sm:$0xff]
    %v205 = vld [vmem:[#allocation6 + $0x140] sm:$0xff]
    %v206 = vld [vmem:[#allocation6 + $0x148] sm:$0xff]
    %v207 = vld [vmem:[#allocation6 + $0x150] sm:$0xff]
    %v208 = vld [vmem:[#allocation6 + $0x158] sm:$0xff]
    %v209 = vld [vmem:[#allocation6 + $0x160] sm:$0xff]
    %v210 = vld [vmem:[#allocation6 + $0x168] sm:$0xff]
    %v211 = vld [vmem:[#allocation6 + $0x170] sm:$0xff]
    %v212 = vld [vmem:[#allocation6 + $0x178] sm:$0xff]
    %v213 = vld [vmem:[#allocation6 + $0x180] sm:$0xff]
    %v214 = vld [vmem:[#allocation6 + $0x188] sm:$0xff]
    %v215 = vld [vmem:[#allocation6 + $0x190] sm:$0xff]
    %v216 = vld [vmem:[#allocation6 + $0x198] sm:$0xff]
    %v217 = vld [vmem:[#allocation6 + $0x1a0] sm:$0xff]
    %v218 = vld [vmem:[#allocation6 + $0x1a8] sm:$0xff]
    %v219 = vld [vmem:[#allocation6 + $0x1b0] sm:$0xff]
    %v220 = vld [vmem:[#allocation6 + $0x1b8] sm:$0xff]
    %v221 = vld [vmem:[#allocation6 + $0x1c0] sm:$0xff]
    %v222 = vld [vmem:[#allocation6 + $0x1c8] sm:$0xff]
    %v223 = vld [vmem:[#allocation6 + $0x1d0] sm:$0xff]
    %v224 = vld [vmem:[#allocation6 + $0x1d8] sm:$0xff]
    %v225 = vld [vmem:[#allocation6 + $0x1e0] sm:$0xff]
    %v226 = vld [vmem:[#allocation6 + $0x1e8] sm:$0xff]
    %v227 = vld [vmem:[#allocation6 + $0x1f0] sm:$0xff]
    %v228 = vld [vmem:[#allocation6 + $0x1f8] sm:$0xff]
    %v229 = vld [vmem:[#allocation6 + $0x200] sm:$0xff]
    %v230 = vld [vmem:[#allocation6 + $0x208] sm:$0xff]
    %v231 = vld [vmem:[#allocation6 + $0x210] sm:$0xff]
    %v232 = vld [vmem:[#allocation6 + $0x218] sm:$0xff]
    %v233 = vld [vmem:[#allocation6 + $0x220] sm:$0xff]
    %v234 = vld [vmem:[#allocation6 + $0x228] sm:$0xff]
    %v235 = vld [vmem:[#allocation6 + $0x230] sm:$0xff]
    %v236 = vld [vmem:[#allocation6 + $0x238] sm:$0xff]
    %v237 = vld [vmem:[#allocation6 + $0x240] sm:$0xff]
    %v238 = vld [vmem:[#allocation6 + $0x248] sm:$0xff]
    %v239 = vld [vmem:[#allocation6 + $0x250] sm:$0xff]
    %v240 = vld [vmem:[#allocation6 + $0x258] sm:$0xff]
    %v241 = vld [vmem:[#allocation6 + $0x260] sm:$0xff]
    %v242 = vld [vmem:[#allocation6 + $0x268] sm:$0xff]
    %v243 = vld [vmem:[#allocation6 + $0x270] sm:$0xff]
    %v244 = vld [vmem:[#allocation6 + $0x278] sm:$0xff]
    %v245 = vld [vmem:[#allocation6 + $0x280] sm:$0xff]
    %v246 = vld [vmem:[#allocation6 + $0x288] sm:$0xff]
    %v247 = vld [vmem:[#allocation6 + $0x290] sm:$0xff]
    %v248 = vld [vmem:[#allocation6 + $0x298] sm:$0xff]
    %v249 = vld [vmem:[#allocation6 + $0x2a0] sm:$0xff]
    %v250 = vld [vmem:[#allocation6 + $0x2a8] sm:$0xff]
    %v251 = vld [vmem:[#allocation6 + $0x2b0] sm:$0xff]
    %v252 = vld [vmem:[#allocation6 + $0x2b8] sm:$0xff]
    %v253 = vld [vmem:[#allocation6 + $0x2c0] sm:$0xff]
    %v254 = vld [vmem:[#allocation6 + $0x2c8] sm:$0xff]
    %v255 = vld [vmem:[#allocation6 + $0x2d0] sm:$0xff]
    %v256 = vld [vmem:[#allocation6 + $0x2d8] sm:$0xff]
    %v257 = vld [vmem:[#allocation6 + $0x2e0] sm:$0xff]
    %v258 = vld [vmem:[#allocation6 + $0x2e8] sm:$0xff]
    %v259 = vld [vmem:[#allocation6 + $0x2f0] sm:$0xff]
    %v260 = vld [vmem:[#allocation6 + $0x2f8] sm:$0xff]
    %v261 = vld [vmem:[#allocation6 + $0x300] sm:$0xff]
    %v262 = vld [vmem:[#allocation6 + $0x308] sm:$0xff]
    %v263 = vld [vmem:[#allocation6 + $0x310] sm:$0xff]
    %v264 = vld [vmem:[#allocation6 + $0x318] sm:$0xff]
    %v265 = vld [vmem:[#allocation6 + $0x320] sm:$0xff]
    %v266 = vld [vmem:[#allocation6 + $0x328] sm:$0xff]
    %v267 = vld [vmem:[#allocation6 + $0x330] sm:$0xff]
    %v268 = vld [vmem:[#allocation6 + $0x338] sm:$0xff]
    %v269 = vld [vmem:[#allocation6 + $0x340] sm:$0xff]
    %v270 = vld [vmem:[#allocation6 + $0x348] sm:$0xff]
    %v271 = vld [vmem:[#allocation6 + $0x350] sm:$0xff]
    %v272 = vld [vmem:[#allocation6 + $0x358] sm:$0xff]
    %v273 = vld [vmem:[#allocation6 + $0x360] sm:$0xff]
    %v274 = vld [vmem:[#allocation6 + $0x368] sm:$0xff]
    %v275 = vld [vmem:[#allocation6 + $0x370] sm:$0xff]
    %v276 = vld [vmem:[#allocation6 + $0x378] sm:$0xff]
    %v277 = vld [vmem:[#allocation6 + $0x380] sm:$0xff]
    %v278 = vld [vmem:[#allocation6 + $0x388] sm:$0xff]
    %v279 = vld [vmem:[#allocation6 + $0x390] sm:$0xff]
    %v280 = vld [vmem:[#allocation6 + $0x398] sm:$0xff]
    %v281 = vld [vmem:[#allocation6 + $0x3a0] sm:$0xff]
    %v282 = vld [vmem:[#allocation6 + $0x3a8] sm:$0xff]
    %v283 = vld [vmem:[#allocation6 + $0x3b0] sm:$0xff]
    %v284 = vld [vmem:[#allocation6 + $0x3b8] sm:$0xff]
    %v285 = vmul.f32 %v45, %v165
    %v286 = vmul.f32 %v46, %v166
    %v287 = vmul.f32 %v47, %v167
    %v288 = vmul.f32 %v48, %v168
    %v289 = vmul.f32 %v49, %v169
    %v290 = vmul.f32 %v50, %v170
    %v291 = vmul.f32 %v51, %v171
    %v292 = vmul.f32 %v52, %v172
    %v293 = vmul.f32 %v53, %v173
    %v294 = vmul.f32 %v54, %v174
    %v295 = vmul.f32 %v55, %v175
    %v296 = vmul.f32 %v56, %v176
    %v297 = vmul.f32 %v57, %v177
    %v298 = vmul.f32 %v58, %v178
    %v299 = vmul.f32 %v59, %v179
    %v300 = vmul.f32 %v60, %v180
    %v301 = vmul.f32 %v61, %v181
    %v302 = vmul.f32 %v62, %v182
    %v303 = vmul.f32 %v63, %v183
    %v304 = vmul.f32 %v64, %v184
    %v305 = vmul.f32 %v65, %v185
    %v306 = vmul.f32 %v66, %v186
    %v307 = vmul.f32 %v67, %v187
    %v308 = vmul.f32 %v68, %v188
    %v309 = vmul.f32 %v69, %v189
    %v310 = vmul.f32 %v70, %v190
    %v311 = vmul.f32 %v71, %v191
    %v312 = vmul.f32 %v72, %v192
    %v313 = vmul.f32 %v73, %v193
    %v314 = vmul.f32 %v74, %v194
    %v315 = vmul.f32 %v75, %v195
    %v316 = vmul.f32 %v76, %v196
    %v317 = vmul.f32 %v77, %v197
    %v318 = vmul.f32 %v78, %v198
    %v319 = vmul.f32 %v79, %v199
    %v320 = vmul.f32 %v80, %v200
    %v321 = vmul.f32 %v81, %v201
    %v322 = vmul.f32 %v82, %v202
    %v323 = vmul.f32 %v83, %v203
    %v324 = vmul.f32 %v84, %v204
    %v325 = vmul.f32 %v85, %v205
    %v326 = vmul.f32 %v86, %v206
    %v327 = vmul.f32 %v87, %v207
    %v328 = vmul.f32 %v88, %v208
    %v329 = vmul.f32 %v89, %v209
    %v330 = vmul.f32 %v90, %v210
    %v331 = vmul.f32 %v91, %v211
    %v332 = vmul.f32 %v92, %v212
    %v333 = vmul.f32 %v93, %v213
    %v334 = vmul.f32 %v94, %v214
    %v335 = vmul.f32 %v95, %v215
    %v336 = vmul.f32 %v96, %v216
    %v337 = vmul.f32 %v97, %v217
    %v338 = vmul.f32 %v98, %v218
    %v339 = vmul.f32 %v99, %v219
    %v340 = vmul.f32 %v100, %v220
    %v341 = vmul.f32 %v101, %v221
    %v342 = vmul.f32 %v102, %v222
    %v343 = vmul.f32 %v103, %v223
    %v344 = vmul.f32 %v104, %v224
    %v345 = vmul.f32 %v105, %v225
    %v346 = vmul.f32 %v106, %v226
    %v347 = vmul.f32 %v107, %v227
    %v348 = vmul.f32 %v108, %v228
    %v349 = vmul.f32 %v109, %v229
    %v350 = vmul.f32 %v110, %v230
    %v351 = vmul.f32 %v111, %v231
    %v352 = vmul.f32 %v112, %v232
    %v353 = vmul.f32 %v113, %v233
    %v354 = vmul.f32 %v114, %v234
    %v355 = vmul.f32 %v115, %v235
    %v356 = vmul.f32 %v116, %v236
    %v357 = vmul.f32 %v117, %v237
    %v358 = vmul.f32 %v118, %v238
    %v359 = vmul.f32 %v119, %v239
    %v360 = vmul.f32 %v120, %v240
    %v361 = vmul.f32 %v121, %v241
    %v362 = vmul.f32 %v122, %v242
    %v363 = vmul.f32 %v123, %v243
    %v364 = vmul.f32 %v124, %v244
    %v365 = vmul.f32 %v125, %v245
    %v366 = vmul.f32 %v126, %v246
    %v367 = vmul.f32 %v127, %v247
    %v368 = vmul.f32 %v128, %v248
    %v369 = vmul.f32 %v129, %v249
    %v370 = vmul.f32 %v130, %v250
    %v371 = vmul.f32 %v131, %v251
    %v372 = vmul.f32 %v132, %v252
    %v373 = vmul.f32 %v133, %v253
    %v374 = vmul.f32 %v134, %v254
    %v375 = vmul.f32 %v135, %v255
    %v376 = vmul.f32 %v136, %v256
    %v377 = vmul.f32 %v137, %v257
    %v378 = vmul.f32 %v138, %v258
    %v379 = vmul.f32 %v139, %v259
    %v380 = vmul.f32 %v140, %v260
    %v381 = vmul.f32 %v141, %v261
    %v382 = vmul.f32 %v142, %v262
    %v383 = vmul.f32 %v143, %v263
    %v384 = vmul.f32 %v144, %v264
    %v385 = vmul.f32 %v145, %v265
    %v386 = vmul.f32 %v146, %v266
    %v387 = vmul.f32 %v147, %v267
    %v388 = vmul.f32 %v148, %v268
    %v389 = vmul.f32 %v149, %v269
    %v390 = vmul.f32 %v150, %v270
    %v391 = vmul.f32 %v151, %v271
    %v392 = vmul.f32 %v152, %v272
    %v393 = vmul.f32 %v153, %v273
    %v394 = vmul.f32 %v154, %v274
    %v395 = vmul.f32 %v155, %v275
    %v396 = vmul.f32 %v156, %v276
    %v397 = vmul.f32 %v157, %v277
    %v398 = vmul.f32 %v158, %v278
    %v399 = vmul.f32 %v159, %v279
    %v400 = vmul.f32 %v160, %v280
    %v401 = vmul.f32 %v161, %v281
    %v402 = vmul.f32 %v162, %v282
    %v403 = vmul.f32 %v163, %v283
    %v404 = vmul.f32 %v164, %v284
    %v405 = vld [vmem:[#allocation2] sm:$0x1]
    %v406 = vadd.f32 %v285, %v286
    %v407 = vadd.f32 %v406, %v287
    %v408 = vadd.f32 %v407, %v288
    %v409 = vadd.f32 %v408, %v289
    %v410 = vadd.f32 %v409, %v290
    %v411 = vadd.f32 %v410, %v291
    %v412 = vadd.f32 %v411, %v292
    %v413 = vadd.f32 %v412, %v293
    %v414 = vadd.f32 %v413, %v294
    %v415 = vadd.f32 %v414, %v295
    %v416 = vadd.f32 %v415, %v296
    %v417 = vadd.f32 %v416, %v297
    %v418 = vadd.f32 %v417, %v298
    %v419 = vadd.f32 %v418, %v299
    %v420 = vadd.f32 %v419, %v300
    %v421 = vadd.f32 %v420, %v301
    %v422 = vadd.f32 %v421, %v302
    %v423 = vadd.f32 %v422, %v303
    %v424 = vadd.f32 %v423, %v304
    %v425 = vadd.f32 %v424, %v305
    %v426 = vadd.f32 %v425, %v306
    %v427 = vadd.f32 %v426, %v307
    %v428 = vadd.f32 %v427, %v308
    %v429 = vadd.f32 %v428, %v309
    %v430 = vadd.f32 %v429, %v310
    %v431 = vadd.f32 %v430, %v311
    %v432 = vadd.f32 %v431, %v312
    %v433 = vadd.f32 %v432, %v313
    %v434 = vadd.f32 %v433, %v314
    %v435 = vadd.f32 %v434, %v315
    %v436 = vadd.f32 %v435, %v316
    %v437 = vadd.f32 %v436, %v317
    %v438 = vadd.f32 %v437, %v318
    %v439 = vadd.f32 %v438, %v319
    %v440 = vadd.f32 %v439, %v320
    %v441 = vadd.f32 %v440, %v321
    %v442 = vadd.f32 %v441, %v322
    %v443 = vadd.f32 %v442, %v323
    %v444 = vadd.f32 %v443, %v324
    %v445 = vadd.f32 %v444, %v325
    %v446 = vadd.f32 %v445, %v326
    %v447 = vadd.f32 %v446, %v327
    %v448 = vadd.f32 %v447, %v328
    %v449 = vadd.f32 %v448, %v329
    %v450 = vadd.f32 %v449, %v330
    %v451 = vadd.f32 %v450, %v331
    %v452 = vadd.f32 %v451, %v332
    %v453 = vadd.f32 %v452, %v333
    %v454 = vadd.f32 %v453, %v334
    %v455 = vadd.f32 %v454, %v335
    %v456 = vadd.f32 %v455, %v336
    %v457 = vadd.f32 %v456, %v337
    %v458 = vadd.f32 %v457, %v338
    %v459 = vadd.f32 %v458, %v339
    %v460 = vadd.f32 %v459, %v340
    %v461 = vadd.f32 %v460, %v341
    %v462 = vadd.f32 %v461, %v342
    %v463 = vadd.f32 %v462, %v343
    %v464 = vadd.f32 %v463, %v344
    %v465 = vadd.f32 %v464, %v345
    %v466 = vadd.f32 %v465, %v346
    %v467 = vadd.f32 %v466, %v347
    %v468 = vadd.f32 %v467, %v348
    %v469 = vadd.f32 %v468, %v349
    %v470 = vadd.f32 %v469, %v350
    %v471 = vadd.f32 %v470, %v351
    %v472 = vadd.f32 %v471, %v352
    %v473 = vadd.f32 %v472, %v353
    %v474 = vadd.f32 %v473, %v354
    %v475 = vadd.f32 %v474, %v355
    %v476 = vadd.f32 %v475, %v356
    %v477 = vadd.f32 %v476, %v357
    %v478 = vadd.f32 %v477, %v358
    %v479 = vadd.f32 %v478, %v359
    %v480 = vadd.f32 %v479, %v360
    %v481 = vadd.f32 %v480, %v361
    %v482 = vadd.f32 %v481, %v362
    %v483 = vadd.f32 %v482, %v363
    %v484 = vadd.f32 %v483, %v364
    %v485 = vadd.f32 %v484, %v365
    %v486 = vadd.f32 %v485, %v366
    %v487 = vadd.f32 %v486, %v367
    %v488 = vadd.f32 %v487, %v368
    %v489 = vadd.f32 %v488, %v369
    %v490 = vadd.f32 %v489, %v370
    %v491 = vadd.f32 %v490, %v371
    %v492 = vadd.f32 %v491, %v372
    %v493 = vadd.f32 %v492, %v373
    %v494 = vadd.f32 %v493, %v374
    %v495 = vadd.f32 %v494, %v375
    %v496 = vadd.f32 %v495, %v376
    %v497 = vadd.f32 %v496, %v377
    %v498 = vadd.f32 %v497, %v378
    %v499 = vadd.f32 %v498, %v379
    %v500 = vadd.f32 %v499, %v380
    %v501 = vadd.f32 %v500, %v381
    %v502 = vadd.f32 %v501, %v382
    %v503 = vadd.f32 %v502, %v383
    %v504 = vadd.f32 %v503, %v384
    %v505 = vadd.f32 %v504, %v385
    %v506 = vadd.f32 %v505, %v386
    %v507 = vadd.f32 %v506, %v387
    %v508 = vadd.f32 %v507, %v388
    %v509 = vadd.f32 %v508, %v389
    %v510 = vadd.f32 %v509, %v390
    %v511 = vadd.f32 %v510, %v391
    %v512 = vadd.f32 %v511, %v392
    %v513 = vadd.f32 %v512, %v393
    %v514 = vadd.f32 %v513, %v394
    %v515 = vadd.f32 %v514, %v395
    %v516 = vadd.f32 %v515, %v396
    %v517 = vadd.f32 %v516, %v397
    %v518 = vadd.f32 %v517, %v398
    %v519 = vadd.f32 %v518, %v399
    %v520 = vadd.f32 %v519, %v400
    %v521 = vadd.f32 %v520, %v401
    %v522 = vadd.f32 %v521, %v402
    %v523 = vadd.f32 %v522, %v403
    %v524 = vadd.f32 %v523, %v404
    %v525 = vrot.slane %v524, 4
    %v526 = vadd.f32 %v524, %v525
    %v527 = vrot.slane %v526, 2
    %v528 = vadd.f32 %v526, %v527
    %v529 = vrot.slane %v528, 1
    %v530 = vadd.f32 %v528, %v529
    %v531 = vadd.f32 %v405, %v530
    %532 = vst [vmem:[#allocation2] sm:$0x1] %v531
    %v533 = vld [vmem:[#allocation2] sm:$0x1]
    %vm534 = vcmask 1040384
    %v535 = vsel %vm534, %v533, 0.0
    %536 = vadd.xlane.f32.xlu0 %v535
    %v537 = vpop.xlane.xlu0 %536
    %vm538 = vcmask 0
    %539 = vst.msk [vmem:[#allocation8] sm:$0x1] %vm538, %v537
    // Predicated region
    $region22: #{dot4.1} parent=1 // pred_check
      _
    $region23: #{dot4.1} parent=1 // pred_check_branch
      %541 = sbr.rel (0) target = $region25
    $region24: #{dot4.1} parent=1 // pred_region
      %s543 = ssub.s32 16, 16
      %544 = vsyncadd [#allocation5], %s543
      %s546 = sshll.u32 [#allocation8], 4
      %s547 = int_to_ptr.vmem [resolvable:$true] %s546
      %549 = dma.vmem_to_hbm [thread:$0]  %s547, 16, %s2, [#allocation5]
    $region25: #{dot4.1} parent=1 // pred_fallthru
      _
    // Predicated region
    $region26: #{dot4.1} parent=1 // pred_check
      _
    $region27: #{dot4.1} parent=1 // pred_check_branch
      %551 = sbr.rel (0) target = $region29
    $region28: #{dot4.1} parent=1 // pred_region
      %552 = dma.done [#allocation5], 16
    $region29: #{dot4.1} parent=1 // pred_fallthru
      _
    %553 = vsyncpa [#allocation4], 1
    %554 = vsyncpa [#allocation7], 1
    %555 = vsyncpa [#allocation5], 1

</llo_original>
